<compile_context>
chip_gen: v6e
topology: v6e:2x2x1
jax: 0.10.0
libtpu: 0.0.40
codegen_flags: <defaults>
</compile_context>

<pallas_src>
import jax
import jax.numpy as jnp
from jax import lax
from jax.experimental import pallas as pl
from jax.experimental.pallas import tpu as pltpu


def _round_up(a, b):
    return ((a + b - 1) // b) * b


# ---------------------------------------------------------------------------
# Kernel 1: per-edge Gaussian weights fused with scaling of the gathered
# per-node support.
#   d0, d1 : (emb, Eb)      spec_domain columns gathered by e0 / e1 (E on lanes)
#   supg   : (K*Fout, Eb)   per-node support gathered by e1, row k*Fout+f = (x@W_k)[:,f]
#   mut    : (K, emb)       mu^T
#   mu2    : (K, 1)         ||mu_k||^2
#   sig    : (K, 1)
#   ht     : (Fout, Eb)     H^T, H[e,:] = sum_k value_k[e] * (x[e1[e],:] @ W_k)
# Padded edge columns have diff == 0 and supg == 0: the exp argument is
# -0.5*sig*||mu_k||^2 <= 0 (no overflow) and the contribution is exactly 0.
# ---------------------------------------------------------------------------
def edge_kernel(d0_ref, d1_ref, supg_ref, mut_ref, mu2_ref, sig_ref, ht_ref):
    K, emb = mut_ref.shape
    Fout, Eb = ht_ref.shape

    diff = d0_ref[...] - d1_ref[...]                       # (emb, Eb) full-tile VPU
    d2 = jnp.sum(diff * diff, axis=0, keepdims=True)       # (1, Eb)   XLU sublane reduce

    # qq[k,e] = ||diff[:,e] - mu[:,k]||^2 = ||diff||^2 - 2*mu_k.diff + ||mu_k||^2
    mtd = jnp.zeros((K, Eb), jnp.float32)
    for d in range(emb):                                   # emb tiny & static -> unrolled
        mtd = mtd + mut_ref[:, d:d + 1] * diff[d:d + 1, :]  # (K,1)*(1,Eb) -> (K,Eb)
    qq = d2 - 2.0 * mtd + mu2_ref[...]                     # (K, Eb)
    vals = jnp.exp(-0.5 * sig_ref[...] * qq)               # (K, Eb), single EUP push

    supg = supg_ref[...]                                   # (K*Fout, Eb)
    acc = jnp.zeros((Fout, Eb), jnp.float32)
    for k in range(K):                                     # K tiny & static -> unrolled
        acc = acc + supg[k * Fout:(k + 1) * Fout, :] * vals[k:k + 1, :]
    ht_ref[...] = acc


# ---------------------------------------------------------------------------
# Kernel 2: segment-sum over destination rows as a lane-dense one-hot matmul.
# Edges are pre-sorted by destination row; the (scalar-prefetched) schedule
# rt_ids/et_ids lists exactly the (row_tile, edge_tile) pairs that intersect,
# plus a few trailing padded steps (masked via nvalid).
#   rt_ids : (G,) int32   row-tile index of grid step g
#   et_ids : (G,) int32   edge-tile index of grid step g
#   nvalid : (1,) int32   number of real steps (g >= nvalid are padding)
#   e0     : (1, Eb)      destination row of each edge, lane-major (-1 for padding)
#   ht     : (Fout, Eb)   H^T block for this edge tile
#   b      : (Fout, 1)    bias
#   out    : (Fout, tm)   transposed output row tile
# ---------------------------------------------------------------------------
def aggregate_kernel(rt_ref, et_ref, nv_ref, e0_ref, ht_ref, b_ref, out_ref):
    g = pl.program_id(0)
    Fout, tm = out_ref.shape
    Eb = e0_ref.shape[1]

    rt = rt_ref[g]
    rt_prev = rt_ref[jnp.maximum(g - 1, 0)]

    @pl.when(jnp.logical_or(g == 0, rt != rt_prev))        # first visit of this row tile
    def _init():
        out_ref[...] = jnp.zeros_like(out_ref) + b_ref[...]   # bias broadcast over lanes

    @pl.when(g < nv_ref[0])                                 # skip trailing padded steps
    def _accumulate():
        col_ids = rt * tm + lax.broadcasted_iota(jnp.int32, (tm, Eb), 0)
        onehot_t = (col_ids == e0_ref[...]).astype(jnp.float32)   # (tm, Eb), in-register
        out_ref[...] += lax.dot_general(                          # (Fout,Eb)x(tm,Eb)->(Fout,tm)
            ht_ref[...], onehot_t,
            dimension_numbers=(((1,), (1,)), ((), ())),
            preferred_element_type=jnp.float32)


def graph_convolution(x, edge_idx, spec_domain, weight, bias, mu, sig,
                      edge_block=1024, row_block=512):
    x = jnp.asarray(x, jnp.float32)
    weight = jnp.asarray(weight, jnp.float32)
    N, Fin = x.shape
    Fout, K = weight.shape[1], weight.shape[2]
    emb = spec_domain.shape[1]
    E = edge_idx.shape[1]

    e0 = edge_idx[0].astype(jnp.int32)
    e1 = edge_idx[1].astype(jnp.int32)

    # Lane-dense tiling: edge tiles and row tiles padded to multiples of 128.
    Eb = min(edge_block, _round_up(E, 128))
    Ep = _round_up(E, Eb)
    tm = min(row_block, _round_up(N, 128))
    Np = _round_up(N, tm)
    n_etiles = Ep // Eb
    n_rtiles = Np // tm

    # --- Host/XLA preprocessing --------------------------------------------
    # Sort edges by destination row so each row tile owns a contiguous edge span.
    order = jnp.argsort(e0)
    e0s = e0[order]
    e1s = e1[order]

    # Per-node support, one dense matmul: sup_flat[k*Fout+f, n] = (x @ W_k)[n, f].
    sup_flat = jnp.einsum('nf,fok->kon', x, weight).reshape(K * Fout, N)

    # Gathers from pre-transposed (node-on-lanes) sources: lane-major results directly,
    # no post-gather transpose of an (E, *) array.
    spec_t = spec_domain.T.astype(jnp.float32)                       # (emb, N)
    d0t = jnp.pad(spec_t[:, e0s], ((0, 0), (0, Ep - E)))             # (emb, Ep)
    d1t = jnp.pad(spec_t[:, e1s], ((0, 0), (0, Ep - E)))             # (emb, Ep)
    supg = jnp.pad(sup_flat[:, e1s], ((0, 0), (0, Ep - E)))          # (K*Fout, Ep)
    e0row = jnp.pad(e0s[None, :], ((0, 0), (0, Ep - E)),
                    constant_values=-1)                              # (1, Ep), lane-major

    mut = mu.T.astype(jnp.float32)                                   # (K, emb)
    mu2 = jnp.sum(mut * mut, axis=1, keepdims=True)                  # (K, 1)
    sigc = sig.astype(jnp.float32).reshape(K, 1)                     # (K, 1)
    b_col = bias[:, None].astype(jnp.float32)                        # (Fout, 1)

    # Per-row-tile edge-tile schedule (scalar prefetch for kernel 2).
    # Row tile ri owns sorted edges [s[ri], s[ri+1]) -> edge tiles
    # floor(s[ri]/Eb) .. floor((s[ri+1]-1)/Eb) (>=1 tile even if empty, for the bias init).
    # Total pairs <= n_etiles + n_rtiles - 1, a static bound.
    s = jnp.searchsorted(e0s, (jnp.arange(n_rtiles + 1) * tm).astype(jnp.int32),
                         side='left').astype(jnp.int32)              # (n_rtiles+1,)
    nonempty = s[1:] > s[:-1]
    j_lo = jnp.minimum(s[:-1] // Eb, n_etiles - 1)
    j_hi = jnp.where(nonempty, (s[1:] - 1) // Eb, j_lo)
    counts = (j_hi - j_lo + 1).astype(jnp.int32)                     # >= 1 per row tile

    G = n_etiles + n_rtiles - 1                                      # static grid length
    g_start = jnp.concatenate([jnp.zeros((1,), jnp.int32),
                               jnp.cumsum(counts)]).astype(jnp.int32)
    gs = jnp.arange(G, dtype=jnp.int32)
    rt_ids = jnp.minimum(jnp.searchsorted(g_start[1:], gs, side='right'),
                         n_rtiles - 1).astype(jnp.int32)
    et_ids = jnp.clip(j_lo[rt_ids] + gs - g_start[rt_ids],
                      0, n_etiles - 1).astype(jnp.int32)
    nvalid = g_start[-1:]                                            # (1,) int32

    # ---- Kernel 1: fused Gaussian weights + support scaling, pipelined over edge tiles.
    ht = pl.pallas_call(
        edge_kernel,
        out_shape=jax.ShapeDtypeStruct((Fout, Ep), jnp.float32),
        grid_spec=pltpu.PrefetchScalarGridSpec(
            num_scalar_prefetch=0,
            grid=(n_etiles,),
            in_specs=[
                pl.BlockSpec((emb, Eb), lambda j: (0, j)),
                pl.BlockSpec((emb, Eb), lambda j: (0, j)),
                pl.BlockSpec((K * Fout, Eb), lambda j: (0, j)),
                pl.BlockSpec((K, emb), lambda j: (0, 0)),
                pl.BlockSpec((K, 1), lambda j: (0, 0)),
                pl.BlockSpec((K, 1), lambda j: (0, 0)),
            ],
            out_specs=pl.BlockSpec((Fout, Eb), lambda j: (0, j)),
        ),
        compiler_params=pltpu.CompilerParams(
            dimension_semantics=("parallel",)),
    )(d0t, d1t, supg, mut, mu2, sigc)                                # (Fout, Ep)

    # ---- Kernel 2: sorted, scalar-prefetched segment-sum over destination rows.
    # TODO(synk): for v7x megacore, a leading parallel split (e.g. over Fout) would let
    # both TensorCores work when n_rtiles is small; single "arbitrary" axis kept here.
    out_t = pl.pallas_call(
        aggregate_kernel,
        out_shape=jax.ShapeDtypeStruct((Fout, Np), jnp.float32),
        grid_spec=pltpu.PrefetchScalarGridSpec(
            num_scalar_prefetch=3,
            grid=(G,),
            in_specs=[
                pl.BlockSpec((1, Eb), lambda g, rt, et, nv: (0, et[g])),
                pl.BlockSpec((Fout, Eb), lambda g, rt, et, nv: (0, et[g])),
                pl.BlockSpec((Fout, 1), lambda g, rt, et, nv: (0, 0)),
            ],
            out_specs=pl.BlockSpec((Fout, tm), lambda g, rt, et, nv: (0, rt[g])),
        ),
        compiler_params=pltpu.CompilerParams(
            dimension_semantics=("arbitrary",)),
    )(rt_ids, et_ids, nvalid, e0row, ht, b_col)                      # (Fout, Np)

    # Lane-dense (Fout, N) slab -> module's (N, Fout) layout.
    # TODO(synk): drop this transpose (an extra HBM read+write) if the consumer can
    # accept the (Fout, N) layout directly.
    return out_t[:, :N].T


# Pure-JAX reference mirroring the PyTorch forward.
def reference_forward(x, edge_idx, spec_domain, weight, bias, mu, sig):
    N = x.shape[0]
    Fout, K = weight.shape[1], weight.shape[2]
    e0, e1 = edge_idx[0], edge_idx[1]
    out = jnp.zeros((N, Fout), jnp.float32)
    for k in range(K):
        support = x @ weight[:, :, k]
        diff = spec_domain[e0] - spec_domain[e1]
        qq = -0.5 * jnp.sum((diff - mu[:, k][None, :]) ** 2, axis=1)
        val = jnp.exp(sig[0, k] * qq)
        phi = jnp.zeros((N, N), jnp.float32).at[e0, e1].add(val)
        out = out + phi @ support
    return out + bias[None, :]


if __name__ == "__main__":
    # Small, deterministic synthetic problem.
    N, in_features, out_features = 16, 8, 16
    emb_size, ker_size, E = 3, 2, 48

    key = jax.random.PRNGKey(0)
    k1, k2, k3, k4, k5, k6 = jax.random.split(key, 6)

    x = jax.random.normal(k1, (N, in_features), dtype=jnp.float32)
    edge_idx = jax.random.randint(k2, (2, E), 0, N, dtype=jnp.int32)
    # small spread so exp(sig * qq) with sig ~ 6e4 stays non-degenerate
    spec_domain = 0.005 * jax.random.normal(k3, (N, emb_size), dtype=jnp.float32)

    # parameters, initialized as in reset_parameters():
    weight = 0.1 * jax.random.normal(k4, (in_features, out_features, ker_size),
                                     dtype=jnp.float32)   # normal(0, 0.1)
    bias = 0.1 * jax.random.normal(k5, (out_features,), dtype=jnp.float32)
    mu = 0.005 * jax.random.normal(k6, (emb_size, ker_size), dtype=jnp.float32)
    sig = jnp.full((1, ker_size), 60140.0, dtype=jnp.float32)

    out = graph_convolution(x, edge_idx, spec_domain, weight, bias, mu, sig)
    out = jax.block_until_ready(out)

    ref = reference_forward(x, edge_idx, spec_domain, weight, bias, mu, sig)
    assert out.shape == (N, out_features)
    assert jnp.allclose(out, ref, atol=1e-4, rtol=1e-4)

    print("KERNEL_OK")
</pallas_src>

<mosaic_0001>
module attributes {stable_mosaic.version = 11 : i64} {
  func.func @edge_kernel(%arg0: i32, %arg1: memref<3x128xf32, #tpu.memory_space<vmem>>, %arg2: memref<3x128xf32, #tpu.memory_space<vmem>>, %arg3: memref<32x128xf32, #tpu.memory_space<vmem>>, %arg4: memref<2x3xf32, #tpu.memory_space<vmem>>, %arg5: memref<2x1xf32, #tpu.memory_space<vmem>>, %arg6: memref<2x1xf32, #tpu.memory_space<vmem>>, %arg7: memref<16x128xf32, #tpu.memory_space<vmem>>) attributes {dimension_semantics = [#tpu.dimension_semantics<parallel>], iteration_bounds = array<i64: 1>, scalar_prefetch = 0 : i64, scratch_operands = 0 : i64, tpu.core_type = #tpu.core_type<tc>, window_params = [{transform_indices = @transform_0, window_bounds = array<i64: 3, 128>}, {transform_indices = @transform_1, window_bounds = array<i64: 3, 128>}, {transform_indices = @transform_2, window_bounds = array<i64: 32, 128>}, {pipeline_mode = #tpu.pipeline_mode<synchronous>, transform_indices = @transform_3, window_bounds = array<i64: 2, 3>}, {pipeline_mode = #tpu.pipeline_mode<synchronous>, transform_indices = @transform_4, window_bounds = array<i64: 2, 1>}, {pipeline_mode = #tpu.pipeline_mode<synchronous>, transform_indices = @transform_5, window_bounds = array<i64: 2, 1>}, {transform_indices = @transform_6, window_bounds = array<i64: 16, 128>}]} {
    %c0 = arith.constant 0 : index
    %c0_0 = arith.constant 0 : index
    %0 = vector.load %arg1[%c0, %c0_0] : memref<3x128xf32, #tpu.memory_space<vmem>>, vector<3x128xf32>
    %c0_1 = arith.constant 0 : index
    %c0_2 = arith.constant 0 : index
    %1 = vector.load %arg2[%c0_1, %c0_2] : memref<3x128xf32, #tpu.memory_space<vmem>>, vector<3x128xf32>
    %2 = arith.subf %0, %1 : vector<3x128xf32>
    %3 = arith.mulf %2, %2 : vector<3x128xf32>
    %cst = arith.constant dense<0.000000e+00> : vector<128xf32>
    %4 = vector.multi_reduction <add>, %3, %cst [0] : vector<3x128xf32> to vector<128xf32>
    %5 = vector.shape_cast %4 : vector<128xf32> to vector<1x128xf32>
    %cst_3 = arith.constant 0.000000e+00 : f32
    %6 = vector.broadcast %cst_3 : f32 to vector<2x128xf32>
    %c0_4 = arith.constant 0 : index
    %c0_5 = arith.constant 0 : index
    %7 = vector.load %arg4[%c0_4, %c0_5] : memref<2x3xf32, #tpu.memory_space<vmem>>, vector<2x1xf32>
    %8 = vector.extract_strided_slice %2 {offsets = [0, 0], sizes = [1, 128], strides = [1, 1]} : vector<3x128xf32> to vector<1x128xf32>
    %9 = vector.broadcast %7 : vector<2x1xf32> to vector<2x128xf32>
    %10 = vector.broadcast %8 : vector<1x128xf32> to vector<2x128xf32>
    %11 = arith.mulf %9, %10 : vector<2x128xf32>
    %12 = arith.addf %6, %11 : vector<2x128xf32>
    %c0_6 = arith.constant 0 : index
    %c1 = arith.constant 1 : index
    %13 = vector.load %arg4[%c0_6, %c1] : memref<2x3xf32, #tpu.memory_space<vmem>>, vector<2x1xf32>
    %14 = vector.extract_strided_slice %2 {offsets = [1, 0], sizes = [1, 128], strides = [1, 1]} : vector<3x128xf32> to vector<1x128xf32>
    %15 = vector.broadcast %13 : vector<2x1xf32> to vector<2x128xf32>
    %16 = vector.broadcast %14 : vector<1x128xf32> to vector<2x128xf32>
    %17 = arith.mulf %15, %16 : vector<2x128xf32>
    %18 = arith.addf %12, %17 : vector<2x128xf32>
    %c0_7 = arith.constant 0 : index
    %c2 = arith.constant 2 : index
    %19 = vector.load %arg4[%c0_7, %c2] : memref<2x3xf32, #tpu.memory_space<vmem>>, vector<2x1xf32>
    %20 = vector.extract_strided_slice %2 {offsets = [2, 0], sizes = [1, 128], strides = [1, 1]} : vector<3x128xf32> to vector<1x128xf32>
    %21 = vector.broadcast %19 : vector<2x1xf32> to vector<2x128xf32>
    %22 = vector.broadcast %20 : vector<1x128xf32> to vector<2x128xf32>
    %23 = arith.mulf %21, %22 : vector<2x128xf32>
    %24 = arith.addf %18, %23 : vector<2x128xf32>
    %cst_8 = arith.constant 2.000000e+00 : f32
    %25 = vector.broadcast %cst_8 : f32 to vector<2x128xf32>
    %26 = arith.mulf %25, %24 : vector<2x128xf32>
    %27 = vector.broadcast %5 : vector<1x128xf32> to vector<2x128xf32>
    %28 = arith.subf %27, %26 : vector<2x128xf32>
    %c0_9 = arith.constant 0 : index
    %c0_10 = arith.constant 0 : index
    %29 = vector.load %arg5[%c0_9, %c0_10] : memref<2x1xf32, #tpu.memory_space<vmem>>, vector<2x1xf32>
    %30 = vector.broadcast %29 : vector<2x1xf32> to vector<2x128xf32>
    %31 = arith.addf %28, %30 : vector<2x128xf32>
    %c0_11 = arith.constant 0 : index
    %c0_12 = arith.constant 0 : index
    %32 = vector.load %arg6[%c0_11, %c0_12] : memref<2x1xf32, #tpu.memory_space<vmem>>, vector<2x1xf32>
    %cst_13 = arith.constant -5.000000e-01 : f32
    %33 = vector.broadcast %cst_13 : f32 to vector<2x1xf32>
    %34 = arith.mulf %33, %32 : vector<2x1xf32>
    %35 = vector.broadcast %34 : vector<2x1xf32> to vector<2x128xf32>
    %36 = arith.mulf %35, %31 : vector<2x128xf32>
    %37 = math.exp %36 : vector<2x128xf32>
    %c0_14 = arith.constant 0 : index
    %c0_15 = arith.constant 0 : index
    %38 = vector.load %arg3[%c0_14, %c0_15] : memref<32x128xf32, #tpu.memory_space<vmem>>, vector<32x128xf32>
    %cst_16 = arith.constant 0.000000e+00 : f32
    %39 = vector.broadcast %cst_16 : f32 to vector<16x128xf32>
    %40 = vector.extract_strided_slice %38 {offsets = [0, 0], sizes = [16, 128], strides = [1, 1]} : vector<32x128xf32> to vector<16x128xf32>
    %41 = vector.extract_strided_slice %37 {offsets = [0, 0], sizes = [1, 128], strides = [1, 1]} : vector<2x128xf32> to vector<1x128xf32>
    %42 = vector.broadcast %41 : vector<1x128xf32> to vector<16x128xf32>
    %43 = arith.mulf %40, %42 : vector<16x128xf32>
    %44 = arith.addf %39, %43 : vector<16x128xf32>
    %45 = vector.extract_strided_slice %38 {offsets = [16, 0], sizes = [16, 128], strides = [1, 1]} : vector<32x128xf32> to vector<16x128xf32>
    %46 = vector.extract_strided_slice %37 {offsets = [1, 0], sizes = [1, 128], strides = [1, 1]} : vector<2x128xf32> to vector<1x128xf32>
    %47 = vector.broadcast %46 : vector<1x128xf32> to vector<16x128xf32>
    %48 = arith.mulf %45, %47 : vector<16x128xf32>
    %49 = arith.addf %44, %48 : vector<16x128xf32>
    %c0_17 = arith.constant 0 : index
    %c0_18 = arith.constant 0 : index
    %50 = vector.load %arg7[%c0_17, %c0_18] : memref<16x128xf32, #tpu.memory_space<vmem>>, vector<16x128xf32>
    tpu.vector_store %arg7[%c0_17, %c0_18], %49 {strides = array<i32>} : memref<16x128xf32, #tpu.memory_space<vmem>>, vector<16x128xf32>,
    return
  }
  func.func @transform_0(%arg0: i32) -> (i32, i32) {
    %c0_i32 = arith.constant 0 : i32
    %c0_i32_0 = arith.constant 0 : i32
    return %c0_i32, %arg0 : i32, i32
  }
  func.func @transform_1(%arg0: i32) -> (i32, i32) {
    %c0_i32 = arith.constant 0 : i32
    %c0_i32_0 = arith.constant 0 : i32
    return %c0_i32, %arg0 : i32, i32
  }
  func.func @transform_2(%arg0: i32) -> (i32, i32) {
    %c0_i32 = arith.constant 0 : i32
    %c0_i32_0 = arith.constant 0 : i32
    return %c0_i32, %arg0 : i32, i32
  }
  func.func @transform_3(%arg0: i32) -> (i32, i32) {
    %c0_i32 = arith.constant 0 : i32
    %c0_i32_0 = arith.constant 0 : i32
    %c0_i32_1 = arith.constant 0 : i32
    return %c0_i32, %c0_i32_0 : i32, i32
  }
  func.func @transform_4(%arg0: i32) -> (i32, i32) {
    %c0_i32 = arith.constant 0 : i32
    %c0_i32_0 = arith.constant 0 : i32
    %c0_i32_1 = arith.constant 0 : i32
    return %c0_i32, %c0_i32_0 : i32, i32
  }
  func.func @transform_5(%arg0: i32) -> (i32, i32) {
    %c0_i32 = arith.constant 0 : i32
    %c0_i32_0 = arith.constant 0 : i32
    %c0_i32_1 = arith.constant 0 : i32
    return %c0_i32, %c0_i32_0 : i32, i32
  }
  func.func @transform_6(%arg0: i32) -> (i32, i32) {
    %c0_i32 = arith.constant 0 : i32
    %c0_i32_0 = arith.constant 0 : i32
    return %c0_i32, %arg0 : i32, i32
  }
}

</mosaic_0001>

<llo_original>
// kernel: tpu_custom_call.1
$region0: #{tpu_custom_call.1}
  #allocation0 [shape = 'u32[]', space=smem, size = 0x4, offset = 0x4, fixed_abs, tag = 'smem constant byte address 0x4 - core index']
  #allocation1 [shape = 'u32[144,128]{1,0:T(1,128)}', space=vmem, size = 0x12000, scoped, tag = 'internal scratch']
  %s0 = inlined_call_operand.vmem [shape: f32[3,128], index: 0, kind: input, shape index: {}]
  %s1 = inlined_call_operand.hbm [shape: f32[3,128], index: 1, kind: input, shape index: {}]
  %s2 = inlined_call_operand.hbm [shape: f32[32,128], index: 2, kind: input, shape index: {}]
  %s3 = inlined_call_operand.vmem [shape: f32[2,3], index: 3, kind: input, shape index: {}]
  %s4 = inlined_call_operand.vmem [shape: f32[2,1], index: 4, kind: input, shape index: {}]
  %s5 = inlined_call_operand.vmem [shape: f32[2,1], index: 5, kind: input, shape index: {}]
  %s6 = inlined_call_operand.hbm [shape: f32[16,128], index: 6, kind: output, shape index: {}]
  %s7 = sld [smem:[#allocation0]]
  $region42: #{tpu_custom_call.1} parent=0
    _
  %s9 = ssub.s32 1, %s7
  %s10 = scalar_select 0, %s9, %s7
  $region1: #{tpu_custom_call.1} parent=0
    #allocation2 [shape = 'u8[2048]{0}', space=vmem, size = 0x800, scoped, tag = 'input window, operand 1, single buffered']
    #allocation3 [shape = 's32[1]{0}', space=sflag, size = 0x4, scoped, tag = 'scoped memory for tpu_custom_call.1']
    #allocation4 [shape = 's32[1]{0}', space=sflag, size = 0x4, scoped, tag = 'scoped memory for tpu_custom_call.1']
    #allocation5 [shape = 'u8[16384]{0}', space=vmem, size = 0x4000, scoped, tag = 'input window, operand 2, single buffered']
    #allocation6 [shape = 's32[1]{0}', space=sflag, size = 0x4, scoped, tag = 'scoped memory for tpu_custom_call.1']
    #allocation7 [shape = 'u8[8192]{0}', space=vmem, size = 0x2000, scoped, tag = 'output window, operand 0, single buffered']
    %11 = vsyncpa [#allocation3], 0
    %12 = vsyncpa [#allocation6], 0
    %13 = vsyncpa [#allocation4], 0
    // Predicated region
    $region2: #{tpu_custom_call.1} parent=1 // pred_check
      _
    $region3: #{tpu_custom_call.1} parent=1 // pred_check_branch
      %15 = sbr.rel (0) target = $region5
    $region4: #{tpu_custom_call.1} parent=1 // pred_region
      _
    $region5: #{tpu_custom_call.1} parent=1 // pred_fallthru
      _
    // Predicated region
    $region6: #{tpu_custom_call.1} parent=1 // pred_check
      _
    $region7: #{tpu_custom_call.1} parent=1 // pred_check_branch
      %17 = sbr.rel (0) target = $region9
    $region8: #{tpu_custom_call.1} parent=1 // pred_region
      %s19 = ssub.s32 64, 64
      %20 = vsyncadd [#allocation3], %s19
      %s22 = sshll.u32 [#allocation2], 4
      %s23 = int_to_ptr.vmem [resolvable:$true] %s22
      %25 = dma.hbm_to_vmem [thread:$0]  %s1, 64, %s23, [#allocation3]
    $region9: #{tpu_custom_call.1} parent=1 // pred_fallthru
      _
    // Predicated region
    $region10: #{tpu_custom_call.1} parent=1 // pred_check
      _
    $region11: #{tpu_custom_call.1} parent=1 // pred_check_branch
      %27 = sbr.rel (0) target = $region13
    $region12: #{tpu_custom_call.1} parent=1 // pred_region
      %s29 = ssub.s32 512, 512
      %30 = vsyncadd [#allocation6], %s29
      %s31 = sshll.u32 [#allocation5], 4
      %s32 = int_to_ptr.vmem [resolvable:$true] %s31
      %37 = dma.hbm_to_vmem [thread:$0]  %s2, 512, %s32, [#allocation6], 128, 128, 8
    $region13: #{tpu_custom_call.1} parent=1 // pred_fallthru
      _
    // Predicated region
    $region14: #{tpu_custom_call.1} parent=1 // pred_check
      _
    $region15: #{tpu_custom_call.1} parent=1 // pred_check_branch
      %39 = sbr.rel (0) target = $region17
    $region16: #{tpu_custom_call.1} parent=1 // pred_region
      _
    $region17: #{tpu_custom_call.1} parent=1 // pred_fallthru
      _
    // Predicated region
    $region18: #{tpu_custom_call.1} parent=1 // pred_check
      _
    $region19: #{tpu_custom_call.1} parent=1 // pred_check_branch
      %41 = sbr.rel (0) target = $region21
    $region20: #{tpu_custom_call.1} parent=1 // pred_region
      _
    $region21: #{tpu_custom_call.1} parent=1 // pred_fallthru
      _
    // Predicated region
    $region22: #{tpu_custom_call.1} parent=1 // pred_check
      _
    $region23: #{tpu_custom_call.1} parent=1 // pred_check_branch
      %43 = sbr.rel (0) target = $region25
    $region24: #{tpu_custom_call.1} parent=1 // pred_region
      _
    $region25: #{tpu_custom_call.1} parent=1 // pred_fallthru
      _
    // Predicated region
    $region26: #{tpu_custom_call.1} parent=1 // pred_check
      _
    $region27: #{tpu_custom_call.1} parent=1 // pred_check_branch
      %45 = sbr.rel (0) target = $region29
    $region28: #{tpu_custom_call.1} parent=1 // pred_region
      %46 = dma.done [#allocation3], 64
    $region29: #{tpu_custom_call.1} parent=1 // pred_fallthru
      _
    // Predicated region
    $region30: #{tpu_custom_call.1} parent=1 // pred_check
      _
    $region31: #{tpu_custom_call.1} parent=1 // pred_check_branch
      %48 = sbr.rel (0) target = $region33
    $region32: #{tpu_custom_call.1} parent=1 // pred_region
      %49 = dma.done [#allocation6], 512
    $region33: #{tpu_custom_call.1} parent=1 // pred_fallthru
      _
    %v50 = vld [vmem:[%s0] sm:$0x7]
    %v51 = vld [vmem:[#allocation2] sm:$0x7]
    %v52 = vsub.f32 %v50, %v51
    %v53 = vmul.f32 %v52, %v52
    %vm54 = vcmask 1042432
    %v55 = vsel %vm54, %v53, 0.0
    %v56 = vrot.slane %v55, 4
    %v57 = vadd.f32 %v55, %v56
    %v58 = vrot.slane %v57, 2
    %v59 = vadd.f32 %v57, %v58
    %v60 = vrot.slane %v59, 1
    %v61 = vadd.f32 %v59, %v60
    %v62 = vld [vmem:[%s3] sm:$0x3]
    %64 = vset.pattern.permute.xlu0 0
    %65 = vperm.xlu0 %64, %v62
    %v66 = vpop.permute.xlu0 %65
    %v68 = vlaneseq
    %v69 = vshrl.u32 %v68, 7
    %v70 = vsub.s32 0, %v69
    %v71 = vrot.slane %v52, %v70
    %v72 = vmul.f32 %v66, %v71
    %v73 = vadd.f32 %v72, 0.0
    %74 = vset.pattern.permute.xlu0 1
    %75 = vperm.xlu0 %74, %v62
    %v76 = vpop.permute.xlu0 %75
    %v78 = vlaneseq
    %v79 = vshrl.u32 %v78, 7
    %v80 = vsub.s32 1, %v79
    %v81 = vrot.slane %v52, %v80
    %v82 = vmul.f32 %v76, %v81
    %v83 = vadd.f32 %v73, %v82
    %84 = vset.pattern.permute.xlu0 2
    %85 = vperm.xlu0 %84, %v62
    %v86 = vpop.permute.xlu0 %85
    %v88 = vlaneseq
    %v89 = vshrl.u32 %v88, 7
    %v90 = vsub.s32 2, %v89
    %v91 = vrot.slane %v52, %v90
    %v92 = vmul.f32 %v86, %v91
    %v93 = vadd.f32 %v83, %v92
    %v94 = vmul.f32 %v93, 2.0
    %v95 = vsub.f32 %v61, %v94
    %v96 = vld [vmem:[%s4] sm:$0x3]
    %98 = vset.pattern.permute.xlu0 0
    %99 = vperm.xlu0 %98, %v96
    %v100 = vpop.permute.xlu0 %99
    %v102 = vadd.f32 %v95, %v100
    %v103 = vld [vmem:[%s5] sm:$0x3]
    %v104 = vmul.f32 %v103, -0.5
    %106 = vset.pattern.permute.xlu0 0
    %107 = vperm.xlu0 %106, %v104
    %v108 = vpop.permute.xlu0 %107
    %v110 = vmul.f32 %v108, %v102
    %v111 = vmul.f32 %v110, 1.442695
    %v112 = vpow.pop %v111
    %v113 = vld [vmem:[#allocation5] sm:$0xff]
    %v114 = vld [vmem:[#allocation5 + $0x8] sm:$0xff]
    %v115 = vld [vmem:[#allocation5 + $0x10] sm:$0xff]
    %v116 = vld [vmem:[#allocation5 + $0x18] sm:$0xff]
    %v117 = vlaneseq
    %v118 = vshrl.u32 %v117, 7
    %v119 = vsub.s32 0, %v118
    %v120 = vrot.slane %v112, %v119
    %v121 = vmul.f32 %v113, %v120
    %v122 = vmul.f32 %v114, %v120
    %v123 = vadd.f32 %v121, 0.0
    %v124 = vadd.f32 %v122, 0.0
    %v125 = vlaneseq
    %v126 = vshrl.u32 %v125, 7
    %v127 = vsub.s32 1, %v126
    %v128 = vrot.slane %v112, %v127
    %v129 = vmul.f32 %v115, %v128
    %v130 = vmul.f32 %v116, %v128
    %v131 = vadd.f32 %v123, %v129
    %v132 = vadd.f32 %v124, %v130
    %133 = vst [vmem:[#allocation7] sm:$0xff] %v131
    %134 = vst [vmem:[#allocation7 + $0x8] sm:$0xff] %v132
    // Predicated region
    $region34: #{tpu_custom_call.1} parent=1 // pred_check
      _
    $region35: #{tpu_custom_call.1} parent=1 // pred_check_branch
      %136 = sbr.rel (0) target = $region37
    $region36: #{tpu_custom_call.1} parent=1 // pred_region
      %s138 = ssub.s32 256, 256
      %139 = vsyncadd [#allocation4], %s138
      %s140 = sshll.u32 [#allocation7], 4
      %s141 = int_to_ptr.vmem [resolvable:$true] %s140
      %146 = dma.vmem_to_hbm [thread:$0]  %s141, 256, %s6, [#allocation4], 128, 128, 8
    $region37: #{tpu_custom_call.1} parent=1 // pred_fallthru
      _
    // Predicated region
    $region38: #{tpu_custom_call.1} parent=1 // pred_check
      _
    $region39: #{tpu_custom_call.1} parent=1 // pred_check_branch
      %148 = sbr.rel (0) target = $region41
    $region40: #{tpu_custom_call.1} parent=1 // pred_region
      %149 = dma.done [#allocation4], 256
    $region41: #{tpu_custom_call.1} parent=1 // pred_fallthru
      _
    %150 = vsyncpa [#allocation3], 1
    %151 = vsyncpa [#allocation6], 1
    %152 = vsyncpa [#allocation4], 1

</llo_original>
